<compile_context>
chip_gen: v6e
topology: v6e:2x2x1
jax: 0.10.0
libtpu: 0.0.40
codegen_flags: <defaults>
</compile_context>

<pallas_src>
import numpy as np
import jax
import jax.numpy as jnp
from jax.experimental import pallas as pl
from jax.experimental.pallas import tpu as pltpu

N = 128            # spatial DoFs per field (q and p)  -> state dim 2N = 256
B = 8              # batch of state snapshots (one f32 sublane tile of rows)
DX = 1.0 / N       # grid spacing of the 1-D wave discretization
MAX_ROWS = 1024    # row-block cap: 1024 x 256 f32 ~= 1 MiB per block


def _hvf_kernel(mu_ref, x_ref, out_ref):
    """One row-block of the Hamiltonian vector field.

    mu_ref : SMEM (1,)        wave speed c (the parameter 'mu')
    x_ref  : VMEM (R, 2N)     [q | p]
    out_ref: VMEM (R, 2N)     [H_op_p | -H_op_q]
    """
    rows = x_ref.shape[0]
    c = mu_ref[0]

    q = x_ref[:, :N]          # 128-lane aligned slice: no relayout
    p = x_ref[:, N:]

    # Tridiagonal stencil for L @ q, L = tridiag(-1, 2, -1), Dirichlet BCs.
    # pltpu.roll is a circular XLU rotate, so zero the wrapped edge lanes to
    # keep the operator tridiagonal rather than circulant.  Only non-negative
    # shifts and a non-negative axis index are used.
    lane = jax.lax.broadcasted_iota(jnp.int32, (rows, N), 1)
    q_im1 = pltpu.roll(q, 1, axis=1)          # [i] <- q[i-1]  (wraps at i=0)
    q_ip1 = pltpu.roll(q, N - 1, axis=1)      # [i] <- q[i+1]  (wraps at i=N-1)
    q_im1 = jnp.where(lane == 0, 0.0, q_im1)       # q_{-1} = 0
    q_ip1 = jnp.where(lane == N - 1, 0.0, q_ip1)   # q_{N}  = 0
    lap_q = 2.0 * q - q_im1 - q_ip1                # (L @ q) per batch row

    # Fold sign + scale into one constant: -H_op_q = -(c^2/dx) * (L @ q).
    # DX = 1/N is a compile-time constant, so this is a single scalar multiply
    # (no divide on the scalar unit).
    neg_scale_q = (c * c) * jnp.float32(-N)

    out_ref[:, :N] = DX * p                 # H_op_p  (full-lane store)
    out_ref[:, N:] = neg_scale_q * lap_q    # -H_op_q (full-lane store)


def _row_block(batch, max_rows=MAX_ROWS):
    """Largest row block <= max_rows that divides `batch` and is a multiple of 8."""
    r = min(batch, max_rows)
    while r > 8 and (batch % r != 0 or r % 8 != 0):
        r -= 8
    if batch % r != 0 or r % 8 != 0:
        raise ValueError(f"batch={batch} must be a multiple of 8")
    return r


def linear_wave_hvf(tensor_in, mu):
    """Pallas wrapper. tensor_in: (B, 2N) f32, mu: (1,) f32 (wave speed c)."""
    batch, two_n = tensor_in.shape
    assert two_n == 2 * N, f"expected state dim {2 * N}, got {two_n}"
    r = _row_block(batch)
    grid = (batch // r,)

    # Advisory cost: ~6 flops per q lane + 1 per p lane; streaming in+out.
    cost = pl.CostEstimate(
        flops=int(7 * batch * N),
        transcendentals=0,
        bytes_accessed=int(2 * batch * two_n * 4),
    )

    return pl.pallas_call(
        _hvf_kernel,
        out_shape=jax.ShapeDtypeStruct(tensor_in.shape, tensor_in.dtype),
        grid=grid,
        in_specs=[
            pl.BlockSpec(memory_space=pltpu.MemorySpace.SMEM),          # mu (scalar)
            pl.BlockSpec((r, two_n), lambda i: (i, 0)),                 # tensor_in rows
        ],
        out_specs=pl.BlockSpec((r, two_n), lambda i: (i, 0)),
        compiler_params=pltpu.CompilerParams(
            dimension_semantics=("parallel",),   # shard rows across TCs on v7x
        ),
        cost_estimate=cost,
    )(mu, tensor_in)


def _make_stiffness(n):
    # Dense reference operator (only used for the pure-JAX check below).
    eye = np.eye(n, dtype=np.float32)
    L = 2.0 * eye \
        - np.eye(n, k=1, dtype=np.float32) \
        - np.eye(n, k=-1, dtype=np.float32)
    return jnp.asarray(L)


if __name__ == "__main__":
    key = jax.random.PRNGKey(0)
    tensor_in = jax.random.normal(key, (B, 2 * N), dtype=jnp.float32)
    mu = jnp.array([1.1], dtype=jnp.float32)        # wave speed c

    out = linear_wave_hvf(tensor_in, mu)
    out = jax.block_until_ready(out)

    # Pure-JAX reference of the same forward semantics (dense stiffness).
    stiffness = _make_stiffness(N)
    q, p = tensor_in[:, :N], tensor_in[:, N:]
    c = mu[0]
    ref_h_op_q = (c * c / DX) * (q @ stiffness)     # L symmetric: q @ L == (L q^T)^T
    ref_h_op_p = DX * p
    ref = jnp.concatenate([ref_h_op_p, -ref_h_op_q], axis=-1)

    assert out.shape == tensor_in.shape and out.dtype == tensor_in.dtype
    assert jnp.allclose(out, ref, rtol=1e-4, atol=1e-4)

    print("KERNEL_OK")
</pallas_src>

<mosaic_0001>
module attributes {stable_mosaic.version = 11 : i64} {
  func.func @_hvf_kernel(%arg0: i32, %arg1: memref<1xf32, #tpu.memory_space<smem>>, %arg2: memref<8x256xf32, #tpu.memory_space<vmem>>, %arg3: memref<8x256xf32, #tpu.memory_space<vmem>>) attributes {dimension_semantics = [#tpu.dimension_semantics<parallel>], iteration_bounds = array<i64: 1>, scalar_prefetch = 0 : i64, scratch_operands = 0 : i64, tpu.core_type = #tpu.core_type<tc>, window_params = [{transform_indices = @transform_0, window_bounds = array<i64: 1>}, {transform_indices = @transform_1, window_bounds = array<i64: 8, 256>}, {transform_indices = @transform_2, window_bounds = array<i64: 8, 256>}]} {
    %c0 = arith.constant 0 : index
    %0 = memref.load %arg1[%c0] : memref<1xf32, #tpu.memory_space<smem>>
    %c0_0 = arith.constant 0 : index
    %c0_1 = arith.constant 0 : index
    %1 = vector.load %arg2[%c0_0, %c0_1] : memref<8x256xf32, #tpu.memory_space<vmem>>, vector<8x128xf32>
    %c0_2 = arith.constant 0 : index
    %c128 = arith.constant 128 : index
    %2 = vector.load %arg2[%c0_2, %c128] : memref<8x256xf32, #tpu.memory_space<vmem>>, vector<8x128xf32>
    %3 = tpu.iota {dimensions = array<i32: 1>} : vector<8x128xi32>
    %c1_i32 = arith.constant 1 : i32
    %4 = tpu.dynamic_rotate %1 by %c1_i32 dim 1 : vector<8x128xf32>, i32 -> vector<8x128xf32>
    %c127_i32 = arith.constant 127 : i32
    %5 = tpu.dynamic_rotate %1 by %c127_i32 dim 1 : vector<8x128xf32>, i32 -> vector<8x128xf32>
    %c0_i32 = arith.constant 0 : i32
    %6 = vector.broadcast %c0_i32 : i32 to vector<8x128xi32>
    %7 = arith.cmpi eq, %3, %6 : vector<8x128xi32>
    %cst = arith.constant 0.000000e+00 : f32
    %8 = vector.broadcast %cst : f32 to vector<8x128xf32>
    %9 = arith.select %7, %8, %4 : vector<8x128xi1>, vector<8x128xf32>
    %c127_i32_3 = arith.constant 127 : i32
    %10 = vector.broadcast %c127_i32_3 : i32 to vector<8x128xi32>
    %11 = arith.cmpi eq, %3, %10 : vector<8x128xi32>
    %cst_4 = arith.constant 0.000000e+00 : f32
    %12 = vector.broadcast %cst_4 : f32 to vector<8x128xf32>
    %13 = arith.select %11, %12, %5 : vector<8x128xi1>, vector<8x128xf32>
    %cst_5 = arith.constant 2.000000e+00 : f32
    %14 = vector.broadcast %cst_5 : f32 to vector<8x128xf32>
    %15 = arith.mulf %14, %1 : vector<8x128xf32>
    %16 = arith.subf %15, %9 : vector<8x128xf32>
    %17 = arith.subf %16, %13 : vector<8x128xf32>
    %18 = arith.mulf %0, %0 : f32
    %cst_6 = arith.constant -1.280000e+02 : f32
    %19 = arith.mulf %18, %cst_6 : f32
    %cst_7 = arith.constant 7.812500e-03 : f32
    %20 = vector.broadcast %cst_7 : f32 to vector<8x128xf32>
    %21 = arith.mulf %20, %2 : vector<8x128xf32>
    %c0_8 = arith.constant 0 : index
    %c0_9 = arith.constant 0 : index
    %22 = vector.load %arg3[%c0_8, %c0_9] : memref<8x256xf32, #tpu.memory_space<vmem>>, vector<8x128xf32>
    tpu.vector_store %arg3[%c0_8, %c0_9], %21 {strides = array<i32>} : memref<8x256xf32, #tpu.memory_space<vmem>>, vector<8x128xf32>,
    %23 = vector.broadcast %19 : f32 to vector<8x128xf32>
    %24 = arith.mulf %23, %17 : vector<8x128xf32>
    %c0_10 = arith.constant 0 : index
    %c128_11 = arith.constant 128 : index
    %25 = vector.load %arg3[%c0_10, %c128_11] : memref<8x256xf32, #tpu.memory_space<vmem>>, vector<8x128xf32>
    tpu.vector_store %arg3[%c0_10, %c128_11], %24 {strides = array<i32>} : memref<8x256xf32, #tpu.memory_space<vmem>>, vector<8x128xf32>,
    return
  }
  func.func @transform_0(%arg0: i32) -> i32 {
    %c0_i32 = arith.constant 0 : i32
    %c0_i32_0 = arith.constant 0 : i32
    return %c0_i32 : i32
  }
  func.func @transform_1(%arg0: i32) -> (i32, i32) {
    %c0_i32 = arith.constant 0 : i32
    %c0_i32_0 = arith.constant 0 : i32
    return %arg0, %c0_i32 : i32, i32
  }
  func.func @transform_2(%arg0: i32) -> (i32, i32) {
    %c0_i32 = arith.constant 0 : i32
    %c0_i32_0 = arith.constant 0 : i32
    return %arg0, %c0_i32 : i32, i32
  }
}

</mosaic_0001>

<llo_original>
// kernel: tpu_custom_call.1
$region0: #{tpu_custom_call.1}
  #allocation0 [shape = 'u32[]', space=smem, size = 0x4, offset = 0x4, fixed_abs, tag = 'smem constant byte address 0x4 - core index']
  #allocation1 [shape = 'u32[144,128]{1,0:T(1,128)}', space=vmem, size = 0x12000, scoped, tag = 'internal scratch']
  #allocation2 [shape = 'f32[1]{0:T(128)S(6)}', space=smem, size = 0x200, scoped, tag = 'scoped memory for tpu_custom_call.1']
  %s0 = inlined_call_operand.<no memory space> [shape: f32[1], index: 0, kind: input, shape index: {}]
  %s1 = inlined_call_operand.hbm [shape: f32[8,256], index: 1, kind: input, shape index: {}]
  %s2 = inlined_call_operand.hbm [shape: f32[8,256], index: 2, kind: output, shape index: {}]
  %s3 = sld [smem:[#allocation0]]
  $region22: #{tpu_custom_call.1} parent=0
    _
  %s5 = ssub.s32 1, %s3
  %s6 = scalar_select 0, %s5, %s3
  %7 = sst [smem:[#allocation2]] %s0
  $region1: #{tpu_custom_call.1} parent=0
    #allocation3 [shape = 'u8[8192]{0}', space=vmem, size = 0x2000, scoped, tag = 'input window, operand 1, single buffered']
    #allocation4 [shape = 's32[1]{0}', space=sflag, size = 0x4, scoped, tag = 'scoped memory for tpu_custom_call.1']
    #allocation5 [shape = 's32[1]{0}', space=sflag, size = 0x4, scoped, tag = 'scoped memory for tpu_custom_call.1']
    #allocation6 [shape = 'u8[8192]{0}', space=vmem, size = 0x2000, scoped, tag = 'output window, operand 0, single buffered']
    %8 = vsyncpa [#allocation4], 0
    %9 = vsyncpa [#allocation5], 0
    // Predicated region
    $region2: #{tpu_custom_call.1} parent=1 // pred_check
      _
    $region3: #{tpu_custom_call.1} parent=1 // pred_check_branch
      %11 = sbr.rel (0) target = $region5
    $region4: #{tpu_custom_call.1} parent=1 // pred_region
      _
    $region5: #{tpu_custom_call.1} parent=1 // pred_fallthru
      _
    // Predicated region
    $region6: #{tpu_custom_call.1} parent=1 // pred_check
      _
    $region7: #{tpu_custom_call.1} parent=1 // pred_check_branch
      %13 = sbr.rel (0) target = $region9
    $region8: #{tpu_custom_call.1} parent=1 // pred_region
      %s15 = ssub.s32 256, 256
      %16 = vsyncadd [#allocation4], %s15
      %s18 = sshll.u32 [#allocation3], 4
      %s19 = int_to_ptr.vmem [resolvable:$true] %s18
      %21 = dma.hbm_to_vmem [thread:$0]  %s1, 256, %s19, [#allocation4]
    $region9: #{tpu_custom_call.1} parent=1 // pred_fallthru
      _
    // Predicated region
    $region10: #{tpu_custom_call.1} parent=1 // pred_check
      _
    $region11: #{tpu_custom_call.1} parent=1 // pred_check_branch
      %23 = sbr.rel (0) target = $region13
    $region12: #{tpu_custom_call.1} parent=1 // pred_region
      %24 = dma.done [#allocation4], 256
    $region13: #{tpu_custom_call.1} parent=1 // pred_fallthru
      _
    %s25 = sld [smem:[#allocation2]]
    %v26 = vld [vmem:[#allocation3] sm:$0xff]
    %v27 = vld [vmem:[#allocation3 + $0x8] sm:$0xff]
    %v28 = vlaneseq
    %v29 = vand.u32 %v28, 127
    %30 = vrot.lane.b32.xlu0 %v26, 1
    %v31 = vpop.permute.xlu0 %30
    %32 = vrot.lane.b32.xlu0 %v26, 127
    %v33 = vpop.permute.xlu0 %32
    %vm34 = vcmp.eq.s32.totalorder %v29, 0
    %v35 = vsel %vm34, 0.0, %v31
    %vm36 = vcmp.eq.s32.totalorder %v29, 127
    %v37 = vsel %vm36, 0.0, %v33
    %v38 = vmul.f32 %v26, 2.0
    %v39 = vsub.f32 %v38, %v35
    %v40 = vsub.f32 %v39, %v37
    %s41 = smul.f32 %s25, %s25
    %s42 = smul.f32 %s41, -128.0
    %v43 = vmul.f32 %v27, 0.0078125
    %44 = vst [vmem:[#allocation6] sm:$0xff] %v43
    %v45 = vstv %s42
    %v46 = vmul.f32 %v45, %v40
    %47 = vst [vmem:[#allocation6 + $0x8] sm:$0xff] %v46
    // Predicated region
    $region14: #{tpu_custom_call.1} parent=1 // pred_check
      _
    $region15: #{tpu_custom_call.1} parent=1 // pred_check_branch
      %49 = sbr.rel (0) target = $region17
    $region16: #{tpu_custom_call.1} parent=1 // pred_region
      %s51 = ssub.s32 256, 256
      %52 = vsyncadd [#allocation5], %s51
      %s54 = sshll.u32 [#allocation6], 4
      %s55 = int_to_ptr.vmem [resolvable:$true] %s54
      %57 = dma.vmem_to_hbm [thread:$0]  %s55, 256, %s2, [#allocation5]
    $region17: #{tpu_custom_call.1} parent=1 // pred_fallthru
      _
    // Predicated region
    $region18: #{tpu_custom_call.1} parent=1 // pred_check
      _
    $region19: #{tpu_custom_call.1} parent=1 // pred_check_branch
      %59 = sbr.rel (0) target = $region21
    $region20: #{tpu_custom_call.1} parent=1 // pred_region
      %60 = dma.done [#allocation5], 256
    $region21: #{tpu_custom_call.1} parent=1 // pred_fallthru
      _
    %61 = vsyncpa [#allocation4], 1
    %62 = vsyncpa [#allocation5], 1

</llo_original>
